<compile_context>
chip_gen: v5e
topology: v5e:2x2
jax: 0.10.0
libtpu: 0.0.40
codegen_flags: <defaults>
</compile_context>

<pallas_src>
import functools

import jax
import jax.numpy as jnp
from jax.experimental import pallas as pl
from jax.experimental.pallas import tpu as pltpu


def a2c_kernel(x_ref, w_ref, b_ref, out_ref, *, n_actions, inv_beta):
    A = n_actions
    x = x_ref[...]                                     # (1, D)

    # ---- fused heads: one MXU matmul, canonical (1,D)x(D,OUT_W) contraction -
    # w_ref is pre-transposed to (D, OUT_W): lane-dense on the MXU, no vxpose.
    y = jax.lax.dot_general(
        x, w_ref[...],
        dimension_numbers=(((1,), (0,)), ((), ())),
        preferred_element_type=jnp.float32) + b_ref[...]          # (1, OUT_W)

    lane = jax.lax.broadcasted_iota(jnp.int32, y.shape, 1)        # (1, OUT_W)
    is_act = lane < A                                             # actor lanes

    # ---- softmax(logits / beta) over action lanes (numerically stable) ------
    z = y * inv_beta                                   # compile-time 1/beta
    m = jnp.max(jnp.where(is_act, z, -jnp.inf), axis=-1, keepdims=True)
    e = jnp.where(is_act, jnp.exp(z - m), 0.0)
    s = jnp.sum(e, axis=-1, keepdims=True)
    p = e * pl.reciprocal(s, approx=False)             # zeros on non-actor lanes

    # ---- entropy of the categorical distribution ----------------------------
    logp = (z - m) - jnp.log(s)
    ent = -jnp.sum(jnp.where(is_act, p * logp, 0.0), axis=-1, keepdims=True)

    # ---- critic value is the lane-A element of the fused matmul -------------
    v = jnp.sum(jnp.where(lane == A, y, 0.0), axis=-1, keepdims=True)

    # ---- pack everything into one lane-dense slab and do a single store -----
    v_b = jnp.broadcast_to(v, y.shape)
    ent_b = jnp.broadcast_to(ent, y.shape)
    out_ref[...] = jnp.where(lane == A, v_b,
                             jnp.where(lane == A + 1, ent_b, p))


def prepare_a2c_params(w_actor, b_actor, w_critic, b_critic):
    """Build the fused, padded, pre-transposed head parameters ONCE (init time).

    Returns (n_actions, w_fused_t (D, out_w), b_fused (1, out_w)).
    Rows 0..A-1 of the fused head are the actor, row A is the critic,
    remaining rows are zero padding up to a 128-lane-dense output width.
    """
    A, D = w_actor.shape
    out_w = ((A + 2 + 127) // 128) * 128               # lane-dense output width
    w_fused_t = jnp.zeros((D, out_w), jnp.float32)
    w_fused_t = w_fused_t.at[:, :A].set(w_actor.astype(jnp.float32).T)
    w_fused_t = w_fused_t.at[:, A].set(w_critic.astype(jnp.float32)[0])
    b_fused = jnp.zeros((1, out_w), jnp.float32)
    b_fused = b_fused.at[0, :A].set(b_actor.astype(jnp.float32))
    b_fused = b_fused.at[0, A].set(b_critic.astype(jnp.float32)[0])
    return A, w_fused_t, b_fused


@functools.partial(jax.jit, static_argnames=("n_actions", "beta"))
def a2c_linear_forward(x, w_fused_t, b_fused, *, n_actions, beta=1.0):
    """x: (D,) float; w_fused_t: (D, out_w); b_fused: (1, out_w) from
    prepare_a2c_params. Returns (pi (A,), v (1,), entropy scalar)."""
    assert beta > 0
    D, out_w = w_fused_t.shape
    A = n_actions
    x2 = x.reshape(1, D).astype(jnp.float32)

    out = pl.pallas_call(
        functools.partial(a2c_kernel, n_actions=A, inv_beta=1.0 / float(beta)),
        out_shape=jax.ShapeDtypeStruct((1, out_w), jnp.float32),
        in_specs=[
            pl.BlockSpec(memory_space=pltpu.MemorySpace.VMEM),   # x
            pl.BlockSpec(memory_space=pltpu.MemorySpace.VMEM),   # fused weight^T
            pl.BlockSpec(memory_space=pltpu.MemorySpace.VMEM),   # fused bias
        ],
        out_specs=pl.BlockSpec(memory_space=pltpu.MemorySpace.VMEM),
    )(x2, w_fused_t, b_fused)

    pi = out[0, :A]
    v = out[0, A:A + 1]
    ent = out[0, A + 1]
    return pi, v, ent


if __name__ == "__main__":
    dim_input, dim_output = 32, 8
    beta = 2.0
    key = jax.random.PRNGKey(0)
    k_x, k_wa, k_ba, k_wc, k_bc = jax.random.split(key, 5)

    # torch.nn.Linear-style init: uniform(-1/sqrt(fan_in), 1/sqrt(fan_in)).
    bound = 1.0 / jnp.sqrt(jnp.float32(dim_input))
    w_actor = jax.random.uniform(k_wa, (dim_output, dim_input), jnp.float32, -bound, bound)
    b_actor = jax.random.uniform(k_ba, (dim_output,), jnp.float32, -bound, bound)
    w_critic = jax.random.uniform(k_wc, (1, dim_input), jnp.float32, -bound, bound)
    b_critic = jax.random.uniform(k_bc, (1,), jnp.float32, -bound, bound)
    x = jax.random.normal(k_x, (dim_input,), jnp.float32)

    # Build fused params ONCE (init time), not per forward call.
    n_actions, w_fused_t, b_fused = prepare_a2c_params(w_actor, b_actor, w_critic, b_critic)
    jax.block_until_ready((w_fused_t, b_fused))

    pi, v, ent = a2c_linear_forward(x, w_fused_t, b_fused,
                                    n_actions=n_actions, beta=beta)
    jax.block_until_ready((pi, v, ent))

    # Reference check in plain JAX
    logits_ref = x @ w_actor.T + b_actor
    pi_ref = jax.nn.softmax(logits_ref / beta)
    v_ref = x @ w_critic.T + b_critic
    ent_ref = -jnp.sum(pi_ref * jnp.log(pi_ref))
    assert jnp.allclose(pi, pi_ref, atol=1e-5), "pi mismatch"
    assert jnp.allclose(v, v_ref, atol=1e-5), "value mismatch"
    assert jnp.allclose(ent, ent_ref, atol=1e-5), "entropy mismatch"
    assert jnp.allclose(jnp.sum(pi), 1.0, atol=1e-5)

    print("KERNEL_OK")
</pallas_src>

<mosaic_0001>
module attributes {stable_mosaic.version = 11 : i64} {
  func.func @a2c_kernel(%arg0: memref<1x32xf32, #tpu.memory_space<vmem>>, %arg1: memref<32x128xf32, #tpu.memory_space<vmem>>, %arg2: memref<1x128xf32, #tpu.memory_space<vmem>>, %arg3: memref<1x128xf32, #tpu.memory_space<vmem>>) attributes {dimension_semantics = [], scalar_prefetch = 0 : i64, scratch_operands = 0 : i64, tpu.core_type = #tpu.core_type<tc>} {
    %c0 = arith.constant 0 : index
    %c0_0 = arith.constant 0 : index
    %0 = vector.load %arg0[%c0, %c0_0] : memref<1x32xf32, #tpu.memory_space<vmem>>, vector<1x32xf32>
    %c0_1 = arith.constant 0 : index
    %c0_2 = arith.constant 0 : index
    %1 = vector.load %arg1[%c0_1, %c0_2] : memref<32x128xf32, #tpu.memory_space<vmem>>, vector<32x128xf32>
    %cst = arith.constant dense<0.000000e+00> : vector<1x128xf32>
    %2 = tpu.matmul %0, %1, %cst {dimension_numbers = #tpu.dot_dimension_numbers<[1], [0], [0], [1], [0, 0, 1, 1], [], []>} : vector<1x32xf32>, vector<32x128xf32>, vector<1x128xf32> -> vector<1x128xf32>
    %c0_3 = arith.constant 0 : index
    %c0_4 = arith.constant 0 : index
    %3 = vector.load %arg2[%c0_3, %c0_4] : memref<1x128xf32, #tpu.memory_space<vmem>>, vector<1x128xf32>
    %4 = arith.addf %2, %3 : vector<1x128xf32>
    %5 = tpu.iota {dimensions = array<i32: 1>} : vector<1x128xi32>
    %c8_i32 = arith.constant 8 : i32
    %6 = vector.broadcast %c8_i32 : i32 to vector<1x128xi32>
    %7 = arith.cmpi slt, %5, %6 : vector<1x128xi32>
    %cst_5 = arith.constant 5.000000e-01 : f32
    %8 = vector.broadcast %cst_5 : f32 to vector<1x128xf32>
    %9 = arith.mulf %4, %8 : vector<1x128xf32>
    %cst_6 = arith.constant 0xFF800000 : f32
    %10 = vector.broadcast %cst_6 : f32 to vector<1x128xf32>
    %11 = arith.select %7, %9, %10 : vector<1x128xi1>, vector<1x128xf32>
    %cst_7 = arith.constant dense<0xFF800000> : vector<1xf32>
    %12 = vector.multi_reduction <maximumf>, %11, %cst_7 [1] : vector<1x128xf32> to vector<1xf32>
    %13 = vector.shape_cast %12 : vector<1xf32> to vector<1x1xf32>
    %14 = vector.broadcast %13 : vector<1x1xf32> to vector<1x128xf32>
    %15 = arith.subf %9, %14 : vector<1x128xf32>
    %16 = math.exp %15 : vector<1x128xf32>
    %cst_8 = arith.constant 0.000000e+00 : f32
    %17 = vector.broadcast %cst_8 : f32 to vector<1x128xf32>
    %18 = arith.select %7, %16, %17 : vector<1x128xi1>, vector<1x128xf32>
    %cst_9 = arith.constant dense<0.000000e+00> : vector<1xf32>
    %19 = vector.multi_reduction <add>, %18, %cst_9 [1] : vector<1x128xf32> to vector<1xf32>
    %20 = vector.shape_cast %19 : vector<1xf32> to vector<1x1xf32>
    %21 = tpu.reciprocal %20 : vector<1x1xf32> -> vector<1x1xf32>
    %22 = vector.broadcast %21 : vector<1x1xf32> to vector<1x128xf32>
    %23 = arith.mulf %18, %22 : vector<1x128xf32>
    %24 = vector.broadcast %13 : vector<1x1xf32> to vector<1x128xf32>
    %25 = arith.subf %9, %24 : vector<1x128xf32>
    %26 = math.log %20 : vector<1x1xf32>
    %27 = vector.broadcast %26 : vector<1x1xf32> to vector<1x128xf32>
    %28 = arith.subf %25, %27 : vector<1x128xf32>
    %29 = arith.mulf %23, %28 : vector<1x128xf32>
    %cst_10 = arith.constant 0.000000e+00 : f32
    %30 = vector.broadcast %cst_10 : f32 to vector<1x128xf32>
    %31 = arith.select %7, %29, %30 : vector<1x128xi1>, vector<1x128xf32>
    %cst_11 = arith.constant dense<0.000000e+00> : vector<1xf32>
    %32 = vector.multi_reduction <add>, %31, %cst_11 [1] : vector<1x128xf32> to vector<1xf32>
    %33 = vector.shape_cast %32 : vector<1xf32> to vector<1x1xf32>
    %cst_12 = arith.constant 0.000000e+00 : f32
    %34 = vector.broadcast %cst_12 : f32 to vector<1x1xf32>
    %35 = arith.subf %34, %33 : vector<1x1xf32>
    %c8_i32_13 = arith.constant 8 : i32
    %36 = vector.broadcast %c8_i32_13 : i32 to vector<1x128xi32>
    %37 = arith.cmpi eq, %5, %36 : vector<1x128xi32>
    %cst_14 = arith.constant 0.000000e+00 : f32
    %38 = vector.broadcast %cst_14 : f32 to vector<1x128xf32>
    %39 = arith.select %37, %4, %38 : vector<1x128xi1>, vector<1x128xf32>
    %cst_15 = arith.constant dense<0.000000e+00> : vector<1xf32>
    %40 = vector.multi_reduction <add>, %39, %cst_15 [1] : vector<1x128xf32> to vector<1xf32>
    %41 = vector.shape_cast %40 : vector<1xf32> to vector<1x1xf32>
    %42 = vector.shape_cast %41 : vector<1x1xf32> to vector<1x1xf32>
    %43 = vector.broadcast %42 : vector<1x1xf32> to vector<1x128xf32>
    %44 = vector.shape_cast %35 : vector<1x1xf32> to vector<1x1xf32>
    %45 = vector.broadcast %44 : vector<1x1xf32> to vector<1x128xf32>
    %c8_i32_16 = arith.constant 8 : i32
    %46 = vector.broadcast %c8_i32_16 : i32 to vector<1x128xi32>
    %47 = arith.cmpi eq, %5, %46 : vector<1x128xi32>
    %c9_i32 = arith.constant 9 : i32
    %48 = vector.broadcast %c9_i32 : i32 to vector<1x128xi32>
    %49 = arith.cmpi eq, %5, %48 : vector<1x128xi32>
    %50 = arith.select %49, %45, %23 : vector<1x128xi1>, vector<1x128xf32>
    %51 = arith.select %47, %43, %50 : vector<1x128xi1>, vector<1x128xf32>
    %c0_17 = arith.constant 0 : index
    %c0_18 = arith.constant 0 : index
    %52 = vector.load %arg3[%c0_17, %c0_18] : memref<1x128xf32, #tpu.memory_space<vmem>>, vector<1x128xf32>
    tpu.vector_store %arg3[%c0_17, %c0_18], %51 {strides = array<i32>} : memref<1x128xf32, #tpu.memory_space<vmem>>, vector<1x128xf32>,
    return
  }
}

</mosaic_0001>

<llo_original>
// kernel: a2c_linear_forward.1
$region0: #{a2c_linear_forward.1}
  #allocation0 [shape = 'u32[]', space=smem, size = 0x4, offset = 0x4, fixed_abs, tag = 'smem constant byte address 0x4 - core index']
  #allocation1 [shape = 'u32[72,128]{1,0:T(1,128)}', space=vmem, size = 0x9000, scoped, tag = 'internal scratch']
  %s0 = inlined_call_operand.vmem [shape: f32[1,32], index: 0, kind: input, shape index: {}]
  %s1 = inlined_call_operand.hbm [shape: f32[32,128], index: 1, kind: input, shape index: {}]
  %s2 = inlined_call_operand.vmem [shape: f32[1,128], index: 2, kind: input, shape index: {}]
  %s3 = inlined_call_operand.vmem [shape: f32[1,128], index: 3, kind: output, shape index: {}]
  %s4 = sld [smem:[#allocation0]]
  $region26: #{a2c_linear_forward.1} parent=0
    _
  %s6 = ssub.s32 1, %s4
  %s7 = scalar_select 0, %s6, %s4
  $region1: #{a2c_linear_forward.1} parent=0
    #allocation2 [shape = 'u8[16384]{0}', space=vmem, size = 0x4000, scoped, tag = 'input window, operand 1, single buffered']
    #allocation3 [shape = 's32[1]{0}', space=sflag, size = 0x4, scoped, tag = 'scoped memory for a2c_linear_forward.1']
    %8 = vsyncpa [#allocation3], 0
    // Predicated region
    $region2: #{a2c_linear_forward.1} parent=1 // pred_check
      _
    $region3: #{a2c_linear_forward.1} parent=1 // pred_check_branch
      %10 = sbr.rel (0) target = $region5
    $region4: #{a2c_linear_forward.1} parent=1 // pred_region
      _
    $region5: #{a2c_linear_forward.1} parent=1 // pred_fallthru
      _
    // Predicated region
    $region6: #{a2c_linear_forward.1} parent=1 // pred_check
      _
    $region7: #{a2c_linear_forward.1} parent=1 // pred_check_branch
      %12 = sbr.rel (0) target = $region9
    $region8: #{a2c_linear_forward.1} parent=1 // pred_region
      %14 = vsyncadd [#allocation3], 0
      %s15 = sshll.u32 %s1, 4
      %s16 = int_to_ptr.hbm [resolvable:$true] %s15
      %s17 = sshll.u32 [#allocation2], 4
      %s18 = int_to_ptr.vmem [resolvable:$true] %s17
      %23 = dma.hbm_to_vmem [thread:$0]  %s16, 512, %s18, [#allocation3], 128, 128, 8
    $region9: #{a2c_linear_forward.1} parent=1 // pred_fallthru
      _
    // Predicated region
    $region10: #{a2c_linear_forward.1} parent=1 // pred_check
      _
    $region11: #{a2c_linear_forward.1} parent=1 // pred_check_branch
      %25 = sbr.rel (0) target = $region13
    $region12: #{a2c_linear_forward.1} parent=1 // pred_region
      _
    $region13: #{a2c_linear_forward.1} parent=1 // pred_fallthru
      _
    // Predicated region
    $region14: #{a2c_linear_forward.1} parent=1 // pred_check
      _
    $region15: #{a2c_linear_forward.1} parent=1 // pred_check_branch
      %27 = sbr.rel (0) target = $region17
    $region16: #{a2c_linear_forward.1} parent=1 // pred_region
      %29 = dma.done [#allocation3], 512
    $region17: #{a2c_linear_forward.1} parent=1 // pred_fallthru
      _
    %v30 = vld [vmem:[%s0] sm:$0x1]
    %v31 = vld [vmem:[#allocation2] sm:$0xff]
    %v32 = vld [vmem:[#allocation2 + $0x8] sm:$0xff]
    %v33 = vld [vmem:[#allocation2 + $0x10] sm:$0xff]
    %v34 = vld [vmem:[#allocation2 + $0x18] sm:$0xff]
    %v35 = vld [vmem:[%s2] sm:$0x1]
    %vm36 = vcmask 261120
    %v38 = vsel %vm36, %v30, 0
    %40 = vmatpush.msra.mxu0 0.0
    %41 = vmatpush.msra.mxu0 0.0
    %42 = vmatpush.msra.mxu0 0.0
    %43 = vmatpush.msra.mxu0 0.0
    %44 = vmatpush.msra.mxu0 0.0
    %45 = vmatpush.msra.mxu0 0.0
    %46 = vmatpush.msra.mxu0 0.0
    %47 = vmatpush.msra.mxu0 0.0
    %48 = vmatpush.msra.mxu0 0.0
    %49 = vmatpush.msra.mxu0 0.0
    %50 = vmatpush.msra.mxu0 0.0
    %51 = vmatpush.msra.mxu0 0.0
    %52 = vmatpush.msra.mxu0 %v34
    %53 = vmatpush.msra.mxu0 %v33
    %54 = vmatpush.msra.mxu0 %v32
    %55 = vmatpush.msra.mxu0 %v31
    %56 = vmatmul.f32.gmra.mxu0 %v38
    %v57 = vpop.f32.mrf.mxu0
    %v58 = vadd.f32 %v35, %v57
    %59 = vdwg.mxu0
    %v60 = vlaneseq
    %v61 = vand.u32 %v60, 127
    %vm62 = vcmp.lt.s32.totalorder %v61, 8
    %v63 = vmul.f32 %v58, 0.5
    %v64 = vsel %vm62, %v63, -inf
    %vm65 = vcmask 1040384
    %v66 = vsel %vm65, %v64, -inf
    %67 = vmax.xlane.f32.xlu0 %v66
    %v68 = vpop.xlane.xlu0 %67
    %v69 = vsub.f32 %v63, %v68
    %v70 = vmul.f32 %v69, 1.442695
    %v71 = vpow.pop %v70
    %v72 = vsel %vm62, %v71, 0.0
    %v73 = vsel %vm65, %v72, 0.0
    %74 = vadd.xlane.f32.xlu0 %v73
    %v75 = vpop.xlane.xlu0 %74
    %v76 = vrcp.pop %v75
    %v77 = vmul.f32 %v75, %v76
    %v78 = vsub.f32 1.0, %v77
    %v79 = vmul.f32 %v76, %v78
    %v80 = vadd.f32 %v76, %v79
    %vm81 = vweird.f32 %v75
    %vm82 = vweird.f32 %v76
    %vm83 = vmor %vm81, %vm82
    %v84 = vsel %vm83, %v76, %v80
    %v85 = vand.u32 2147483647, %v75
    %vm86 = vcmp.eq.f32.partialorder %v85, 8.507059e+37
    %v87 = vand.u32 %v75, 2147483648
    %v88 = vor.u32 1.1754944e-38, %v87
    %v89 = vsel %vm86, %v88, %v84
    %v90 = vmul.f32 %v72, %v89
    %v91 = vlog2.pop %v75
    %v92 = vmul.f32 %v91, 0.6931472
    %v93 = vsub.f32 %v69, %v92
    %v94 = vmul.f32 %v90, %v93
    %v95 = vsel %vm62, %v94, 0.0
    %v96 = vsel %vm65, %v95, 0.0
    %97 = vadd.xlane.f32.xlu0 %v96
    %v98 = vpop.xlane.xlu0 %97
    %v99 = vsub.f32 0.0, %v98
    %vm100 = vcmp.eq.s32.totalorder %v61, 8
    %v101 = vsel %vm100, %v58, 0.0
    %v102 = vsel %vm65, %v101, 0.0
    %103 = vadd.xlane.f32.xlu0 %v102
    %v104 = vpop.xlane.xlu0 %103
    %vm105 = vcmp.eq.s32.totalorder %v61, 9
    %v106 = vsel %vm105, %v99, %v90
    %v107 = vsel %vm100, %v104, %v106
    %108 = vst [vmem:[%s3] sm:$0x1] %v107
    // Predicated region
    $region18: #{a2c_linear_forward.1} parent=1 // pred_check
      _
    $region19: #{a2c_linear_forward.1} parent=1 // pred_check_branch
      %110 = sbr.rel (0) target = $region21
    $region20: #{a2c_linear_forward.1} parent=1 // pred_region
      _
    $region21: #{a2c_linear_forward.1} parent=1 // pred_fallthru
      _
    // Predicated region
    $region22: #{a2c_linear_forward.1} parent=1 // pred_check
      _
    $region23: #{a2c_linear_forward.1} parent=1 // pred_check_branch
      %112 = sbr.rel (0) target = $region25
    $region24: #{a2c_linear_forward.1} parent=1 // pred_region
      _
    $region25: #{a2c_linear_forward.1} parent=1 // pred_fallthru
      _
    %113 = vsyncpa [#allocation3], 1

</llo_original>
